<compile_context>
chip_gen: v7x
topology: tpu7x:2x2x1
jax: 0.10.0
libtpu: 0.0.40
codegen_flags: <defaults>
</compile_context>

<pallas_src>
import functools

import jax
import jax.numpy as jnp
from jax.experimental import pallas as pl
from jax.experimental.pallas import tpu as pltpu


# ----------------------------- kernels --------------------------------------


def _ffn_resident_kernel(x_ref, w1_ref, b1_ref, w2_ref, b2_ref, o_ref):
    """Weights fully VMEM-resident: one pass over full d_ff per token tile."""
    # (tm, d_model) @ (d_model, d_ff) -> f32 on the MXU (bf16 inputs).
    h = jnp.dot(x_ref[...], w1_ref[...], preferred_element_type=jnp.float32)
    h = jnp.maximum(h + b1_ref[...], 0.0)          # bias + ReLU (f32)
    # dropout: identity (eval mode)
    out = jnp.dot(h.astype(w2_ref.dtype), w2_ref[...],
                  preferred_element_type=jnp.float32)
    o_ref[...] = (out + b2_ref[...]).astype(o_ref.dtype)


def _ffn_streaming_kernel(x_ref, w1_ref, b1_ref, w2_ref, b2_ref, o_ref, acc_ref):
    """d_ff streamed in tiles; partial second matmul accumulated in f32 VMEM."""
    f = pl.program_id(1)

    @pl.when(f == 0)
    def _init():
        acc_ref[...] = jnp.zeros_like(acc_ref)

    h = jnp.dot(x_ref[...], w1_ref[...], preferred_element_type=jnp.float32)
    h = jnp.maximum(h + b1_ref[...], 0.0)          # bias + ReLU
    # dropout: identity (eval mode)
    acc_ref[...] += jnp.dot(h.astype(w2_ref.dtype), w2_ref[...],
                            preferred_element_type=jnp.float32)

    @pl.when(f == pl.num_programs(1) - 1)
    def _finalize():
        o_ref[...] = (acc_ref[...] + b2_ref[...]).astype(o_ref.dtype)


# ----------------------------- helpers ---------------------------------------


def _round_up(x, m):
    return ((x + m - 1) // m) * m


def _vmem_capacity_bytes():
    try:
        cap = int(pltpu.get_tpu_info().vmem_capacity_bytes)
        if cap > 0:
            return cap
    except Exception:
        pass
    return 64 * 2**20          # conservative fallback (v7x-sized VMEM)


def _pick_ff_tile(d_ff, target):
    """Return (tf, d_ff_padded): tf is a multiple of 128 dividing the padded
    d_ff and <= target (or tf == d_ff when d_ff <= target)."""
    if d_ff <= target:
        return d_ff, d_ff
    t = (target // 128) * 128
    while t >= 128:
        if d_ff % t == 0:
            return t, d_ff
        t -= 128
    t = max(128, (target // 128) * 128)
    return t, _round_up(d_ff, t)               # pad d_ff instead of one huge block


def _pick_token_tile(tokens, target):
    """Multiple of 16 (bf16 sublane packing); >= 2 tiles when tokens allow so
    the 'parallel' axis can shard across both v7x TensorCores."""
    tm = min(target, max(16, _round_up(tokens, 16)))
    if tokens >= 256:
        half = _round_up(-(-tokens // 2), 128)
        tm = min(tm, max(128, half))
    return tm


# ----------------------------- factory / wrapper -----------------------------


def make_positionwise_feed_forward(w1, b1, w2, b2, *,
                                   compute_dtype=jnp.bfloat16,
                                   token_tile=None, ff_tile=None,
                                   force_streaming=False):
    """Build the FFN forward fn.  PyTorch nn.Linear layouts:
       w1: (d_ff, d_model), b1: (d_ff,), w2: (d_model, d_ff), b2: (d_model,).
    All weight processing (transpose, bf16 cast, d_ff padding) happens here,
    once, not per call."""
    d_ff, d_model = w1.shape
    itemsize = jnp.dtype(compute_dtype).itemsize

    vmem_cap = _vmem_capacity_bytes()
    big_vmem = vmem_cap >= 100 * 2**20             # v5e/v6e (128 MiB) vs v7x (64 MiB)
    if token_tile is None:
        token_tile = 512 if big_vmem else 256
    if ff_tile is None:
        ff_tile = 2048 if big_vmem else 512

    # --- hoisted weight prep (parameter-load time, not per call) ---
    w1_t = jnp.asarray(w1).T.astype(compute_dtype)            # (d_model, d_ff)
    w2_t = jnp.asarray(w2).T.astype(compute_dtype)            # (d_ff, d_model)
    b1_2d = jnp.asarray(b1, jnp.float32).reshape(1, d_ff)
    b2_2d = jnp.asarray(b2, jnp.float32).reshape(1, d_model)

    weight_bytes = (w1_t.size + w2_t.size) * itemsize
    # Conservative resident estimate: weights counted double-buffered, plus
    # double-buffered x/out tiles at the largest token tile, f32 hidden, biases.
    resident_est = (2 * weight_bytes
                    + 2 * token_tile * d_model * (itemsize + 4)
                    + token_tile * d_ff * 4
                    + (d_ff + d_model) * 8)
    use_resident = (not force_streaming) and resident_est <= int(0.65 * vmem_cap)

    if use_resident:
        tf, d_ff_pad = d_ff, d_ff
    else:
        tf, d_ff_pad = _pick_ff_tile(d_ff, ff_tile)
        if d_ff_pad != d_ff:
            pad = d_ff_pad - d_ff
            w1_t = jnp.pad(w1_t, ((0, 0), (0, pad)))          # zero cols -> h=0
            b1_2d = jnp.pad(b1_2d, ((0, 0), (0, pad)))
            w2_t = jnp.pad(w2_t, ((0, pad), (0, 0)))          # zero rows -> no contrib

    def _forward(x):
        batch, seq, dm = x.shape
        assert dm == d_model
        tokens = batch * seq
        tm = _pick_token_tile(tokens, token_tile)
        padded_tokens = _round_up(tokens, tm)
        n_tok = padded_tokens // tm
        out_itemsize = jnp.dtype(x.dtype).itemsize

        x2d = x.reshape(tokens, d_model).astype(compute_dtype)
        if padded_tokens != tokens:
            x2d = jnp.pad(x2d, ((0, padded_tokens - tokens), (0, 0)))

        flops = 4 * padded_tokens * d_model * d_ff_pad        # two matmuls

        if use_resident:
            vmem_est = (2 * weight_bytes
                        + 2 * tm * d_model * (itemsize + out_itemsize)
                        + tm * d_ff_pad * 4
                        + (d_ff_pad + d_model) * 8)
            vmem_limit = int(min(0.8 * vmem_cap,
                                 max(32 * 2**20, 1.3 * vmem_est)))
            cost = pl.CostEstimate(
                flops=flops, transcendentals=0,
                bytes_accessed=(x2d.size * itemsize
                                + weight_bytes
                                + (b1_2d.size + b2_2d.size) * 4
                                + padded_tokens * d_model * out_itemsize))
            out2d = pl.pallas_call(
                _ffn_resident_kernel,
                out_shape=jax.ShapeDtypeStruct((padded_tokens, d_model), x.dtype),
                grid_spec=pltpu.PrefetchScalarGridSpec(
                    num_scalar_prefetch=0,
                    grid=(n_tok,),
                    in_specs=[
                        pl.BlockSpec((tm, d_model), lambda i: (i, 0)),       # x tile
                        pl.BlockSpec((d_model, d_ff_pad), lambda i: (0, 0)), # W1^T (resident)
                        pl.BlockSpec((1, d_ff_pad), lambda i: (0, 0)),       # b1
                        pl.BlockSpec((d_ff_pad, d_model), lambda i: (0, 0)), # W2^T (resident)
                        pl.BlockSpec((1, d_model), lambda i: (0, 0)),        # b2
                    ],
                    out_specs=pl.BlockSpec((tm, d_model), lambda i: (i, 0)),
                ),
                compiler_params=pltpu.CompilerParams(
                    dimension_semantics=("parallel",),
                    vmem_limit_bytes=vmem_limit,
                ),
                cost_estimate=cost,
            )(x2d, w1_t, b1_2d, w2_t, b2_2d)
        else:
            n_ff = d_ff_pad // tf
            vmem_est = (2 * (tm * d_model * itemsize            # x tiles
                             + d_model * tf * itemsize          # W1 tiles
                             + tf * d_model * itemsize          # W2 tiles
                             + tf * 4 + d_model * 4             # bias tiles
                             + tm * d_model * out_itemsize)     # out tiles
                        + tm * d_model * 4                      # f32 acc scratch
                        + tm * tf * 4)                          # f32 hidden
            vmem_limit = int(min(0.8 * vmem_cap,
                                 max(32 * 2**20, 1.5 * vmem_est)))
            cost = pl.CostEstimate(
                flops=flops, transcendentals=0,
                # Weights are re-streamed once per token tile under this grid.
                bytes_accessed=(x2d.size * itemsize
                                + n_tok * weight_bytes
                                + n_tok * (b1_2d.size + b2_2d.size) * 4
                                + padded_tokens * d_model * out_itemsize))
            out2d = pl.pallas_call(
                _ffn_streaming_kernel,
                out_shape=jax.ShapeDtypeStruct((padded_tokens, d_model), x.dtype),
                grid_spec=pltpu.PrefetchScalarGridSpec(
                    num_scalar_prefetch=0,
                    grid=(n_tok, n_ff),
                    in_specs=[
                        pl.BlockSpec((tm, d_model), lambda i, f: (i, 0)),   # x tile
                        pl.BlockSpec((d_model, tf), lambda i, f: (0, f)),   # W1^T cols
                        pl.BlockSpec((1, tf), lambda i, f: (0, f)),         # b1 chunk
                        pl.BlockSpec((tf, d_model), lambda i, f: (f, 0)),   # W2^T rows
                        pl.BlockSpec((1, d_model), lambda i, f: (0, 0)),    # b2
                    ],
                    out_specs=pl.BlockSpec((tm, d_model), lambda i, f: (i, 0)),
                    scratch_shapes=[pltpu.VMEM((tm, d_model), jnp.float32)],
                ),
                compiler_params=pltpu.CompilerParams(
                    dimension_semantics=("parallel", "arbitrary"),
                    vmem_limit_bytes=vmem_limit,
                ),
                cost_estimate=cost,
            )(x2d, w1_t, b1_2d, w2_t, b2_2d)

        if padded_tokens != tokens:
            out2d = out2d[:tokens]
        return out2d.reshape(batch, seq, d_model)

    return jax.jit(_forward)


def positionwise_feed_forward(x, w1, b1, w2, b2, **kwargs):
    """One-shot convenience wrapper (weight prep not amortized across calls)."""
    return make_positionwise_feed_forward(w1, b1, w2, b2, **kwargs)(x)


# ----------------------------- reference -------------------------------------


def _reference(x, w1, b1, w2, b2, compute_dtype=jnp.bfloat16):
    # Same bf16 inputs / f32 accumulation as the kernel.
    xc = x.astype(compute_dtype)
    w1c = w1.astype(compute_dtype)
    w2c = w2.astype(compute_dtype)
    h = jnp.einsum("bsd,fd->bsf", xc, w1c,
                   preferred_element_type=jnp.float32) + b1
    h = jnp.maximum(h, 0.0)
    out = jnp.einsum("bsf,df->bsd", h.astype(compute_dtype), w2c,
                     preferred_element_type=jnp.float32) + b2
    return out.astype(x.dtype)


if __name__ == "__main__":
    # Small shapes consistent with the module: batch=2, seq=8, d_model=32, d_ff=64
    batch, seq, d_model, d_ff = 2, 8, 32, 64

    key = jax.random.PRNGKey(0)
    kx, k1, kb1, k2, kb2 = jax.random.split(key, 5)

    x = jax.random.normal(kx, (batch, seq, d_model), dtype=jnp.float32)
    # nn.Linear(d_model, d_ff): weight (d_ff, d_model), bias (d_ff,)
    w1 = jax.random.normal(k1, (d_ff, d_model), dtype=jnp.float32) * (1.0 / d_model ** 0.5)
    b1 = jax.random.normal(kb1, (d_ff,), dtype=jnp.float32) * 0.01
    # nn.Linear(d_ff, d_model): weight (d_model, d_ff), bias (d_model,)
    w2 = jax.random.normal(k2, (d_model, d_ff), dtype=jnp.float32) * (1.0 / d_ff ** 0.5)
    b2 = jax.random.normal(kb2, (d_model,), dtype=jnp.float32) * 0.01

    ref = _reference(x, w1, b1, w2, b2)

    # Weight-resident plan (chosen automatically for these small weights).
    ffn = make_positionwise_feed_forward(w1, b1, w2, b2)
    out = jax.block_until_ready(ffn(x))
    assert out.shape == (batch, seq, d_model)
    assert jnp.allclose(out, ref, atol=2e-2, rtol=2e-2), "resident path mismatch"

    # Streaming (d_ff-tiled) plan, exercised explicitly for coverage.
    ffn_stream = make_positionwise_feed_forward(w1, b1, w2, b2, force_streaming=True)
    out_s = jax.block_until_ready(ffn_stream(x))
    assert jnp.allclose(out_s, ref, atol=2e-2, rtol=2e-2), "streaming path mismatch"

    print("KERNEL_OK")
</pallas_src>

<mosaic_0001>
module attributes {stable_mosaic.version = 11 : i64} {
  func.func @_ffn_resident_kernel(%arg0: i32, %arg1: memref<16x32xbf16, #tpu.memory_space<vmem>>, %arg2: memref<32x64xbf16, #tpu.memory_space<vmem>>, %arg3: memref<1x64xf32, #tpu.memory_space<vmem>>, %arg4: memref<64x32xbf16, #tpu.memory_space<vmem>>, %arg5: memref<1x32xf32, #tpu.memory_space<vmem>>, %arg6: memref<16x32xf32, #tpu.memory_space<vmem>>) attributes {dimension_semantics = [#tpu.dimension_semantics<parallel>], iteration_bounds = array<i64: 1>, scalar_prefetch = 0 : i64, scratch_operands = 0 : i64, tpu.core_type = #tpu.core_type<tc>, window_params = [{transform_indices = @transform_0, window_bounds = array<i64: 16, 32>}, {pipeline_mode = #tpu.pipeline_mode<synchronous>, transform_indices = @transform_1, window_bounds = array<i64: 32, 64>}, {pipeline_mode = #tpu.pipeline_mode<synchronous>, transform_indices = @transform_2, window_bounds = array<i64: 1, 64>}, {pipeline_mode = #tpu.pipeline_mode<synchronous>, transform_indices = @transform_3, window_bounds = array<i64: 64, 32>}, {pipeline_mode = #tpu.pipeline_mode<synchronous>, transform_indices = @transform_4, window_bounds = array<i64: 1, 32>}, {transform_indices = @transform_5, window_bounds = array<i64: 16, 32>}]} {
    %c0 = arith.constant 0 : index
    %c0_0 = arith.constant 0 : index
    %0 = vector.load %arg1[%c0, %c0_0] : memref<16x32xbf16, #tpu.memory_space<vmem>>, vector<16x32xbf16>
    %c0_1 = arith.constant 0 : index
    %c0_2 = arith.constant 0 : index
    %1 = vector.load %arg2[%c0_1, %c0_2] : memref<32x64xbf16, #tpu.memory_space<vmem>>, vector<32x64xbf16>
    %cst = arith.constant dense<0.000000e+00> : vector<16x64xf32>
    %2 = tpu.matmul %0, %1, %cst {dimension_numbers = #tpu.dot_dimension_numbers<[1], [0], [0], [1], [0, 0, 1, 1], [], []>} : vector<16x32xbf16>, vector<32x64xbf16>, vector<16x64xf32> -> vector<16x64xf32>
    %c0_3 = arith.constant 0 : index
    %c0_4 = arith.constant 0 : index
    %3 = vector.load %arg3[%c0_3, %c0_4] : memref<1x64xf32, #tpu.memory_space<vmem>>, vector<1x64xf32>
    %4 = vector.broadcast %3 : vector<1x64xf32> to vector<16x64xf32>
    %5 = arith.addf %2, %4 : vector<16x64xf32>
    %cst_5 = arith.constant 0.000000e+00 : f32
    %6 = vector.broadcast %cst_5 : f32 to vector<16x64xf32>
    %7 = arith.maximumf %5, %6 : vector<16x64xf32>
    %8 = arith.truncf %7 : vector<16x64xf32> to vector<16x64xbf16>
    %c0_6 = arith.constant 0 : index
    %c0_7 = arith.constant 0 : index
    %9 = vector.load %arg4[%c0_6, %c0_7] : memref<64x32xbf16, #tpu.memory_space<vmem>>, vector<64x32xbf16>
    %cst_8 = arith.constant dense<0.000000e+00> : vector<16x32xf32>
    %10 = tpu.matmul %8, %9, %cst_8 {dimension_numbers = #tpu.dot_dimension_numbers<[1], [0], [0], [1], [0, 0, 1, 1], [], []>} : vector<16x64xbf16>, vector<64x32xbf16>, vector<16x32xf32> -> vector<16x32xf32>
    %c0_9 = arith.constant 0 : index
    %c0_10 = arith.constant 0 : index
    %11 = vector.load %arg5[%c0_9, %c0_10] : memref<1x32xf32, #tpu.memory_space<vmem>>, vector<1x32xf32>
    %12 = vector.broadcast %11 : vector<1x32xf32> to vector<16x32xf32>
    %13 = arith.addf %10, %12 : vector<16x32xf32>
    %c0_11 = arith.constant 0 : index
    %c0_12 = arith.constant 0 : index
    %14 = vector.load %arg6[%c0_11, %c0_12] : memref<16x32xf32, #tpu.memory_space<vmem>>, vector<16x32xf32>
    tpu.vector_store %arg6[%c0_11, %c0_12], %13 {strides = array<i32>} : memref<16x32xf32, #tpu.memory_space<vmem>>, vector<16x32xf32>,
    return
  }
  func.func @transform_0(%arg0: i32) -> (i32, i32) {
    %c0_i32 = arith.constant 0 : i32
    %c0_i32_0 = arith.constant 0 : i32
    return %arg0, %c0_i32 : i32, i32
  }
  func.func @transform_1(%arg0: i32) -> (i32, i32) {
    %c0_i32 = arith.constant 0 : i32
    %c0_i32_0 = arith.constant 0 : i32
    %c0_i32_1 = arith.constant 0 : i32
    return %c0_i32, %c0_i32_0 : i32, i32
  }
  func.func @transform_2(%arg0: i32) -> (i32, i32) {
    %c0_i32 = arith.constant 0 : i32
    %c0_i32_0 = arith.constant 0 : i32
    %c0_i32_1 = arith.constant 0 : i32
    return %c0_i32, %c0_i32_0 : i32, i32
  }
  func.func @transform_3(%arg0: i32) -> (i32, i32) {
    %c0_i32 = arith.constant 0 : i32
    %c0_i32_0 = arith.constant 0 : i32
    %c0_i32_1 = arith.constant 0 : i32
    return %c0_i32, %c0_i32_0 : i32, i32
  }
  func.func @transform_4(%arg0: i32) -> (i32, i32) {
    %c0_i32 = arith.constant 0 : i32
    %c0_i32_0 = arith.constant 0 : i32
    %c0_i32_1 = arith.constant 0 : i32
    return %c0_i32, %c0_i32_0 : i32, i32
  }
  func.func @transform_5(%arg0: i32) -> (i32, i32) {
    %c0_i32 = arith.constant 0 : i32
    %c0_i32_0 = arith.constant 0 : i32
    return %arg0, %c0_i32 : i32, i32
  }
}

</mosaic_0001>

<llo_original>
// kernel: _forward.1
$region0: #{_forward.1}
  #allocation0 [shape = 'u32[]', space=smem, size = 0x4, offset = 0x4, fixed_abs, tag = 'smem constant byte address 0x4 - core index']
  #allocation1 [shape = 'u32[144,128]{1,0:T(1,128)}', space=vmem, size = 0x12000, scoped, tag = 'internal scratch']
  %s0 = inlined_call_operand.vmem [shape: bf16[16,32], index: 0, kind: input, shape index: {}]
  %s1 = inlined_call_operand.hbm [shape: bf16[32,64], index: 1, kind: input, shape index: {}]
  %s2 = inlined_call_operand.vmem [shape: f32[1,64], index: 2, kind: input, shape index: {}]
  %s3 = inlined_call_operand.vmem [shape: bf16[64,32], index: 3, kind: input, shape index: {}]
  %s4 = inlined_call_operand.vmem [shape: f32[1,32], index: 4, kind: input, shape index: {}]
  %s5 = inlined_call_operand.hbm [shape: f32[16,32], index: 5, kind: output, shape index: {}]
  %s6 = sld [smem:[#allocation0]]
  $region34: #{_forward.1} parent=0
    _
  %s8 = ssub.s32 1, %s6
  %s9 = scalar_select 0, %s8, %s6
  $region1: #{_forward.1} parent=0
    #allocation2 [shape = 'u8[8192]{0}', space=vmem, size = 0x2000, scoped, tag = 'input window, operand 1, single buffered']
    #allocation3 [shape = 's32[1]{0}', space=sflag, size = 0x4, scoped, tag = 'scoped memory for _forward.1']
    #allocation4 [shape = 's32[1]{0}', space=sflag, size = 0x4, scoped, tag = 'scoped memory for _forward.1']
    #allocation5 [shape = 'u8[8192]{0}', space=vmem, size = 0x2000, scoped, tag = 'output window, operand 0, single buffered']
    %10 = vsyncpa [#allocation3], 0
    %11 = vsyncpa [#allocation4], 0
    // Predicated region
    $region2: #{_forward.1} parent=1 // pred_check
      _
    $region3: #{_forward.1} parent=1 // pred_check_branch
      %13 = sbr.rel (0) target = $region5
    $region4: #{_forward.1} parent=1 // pred_region
      _
    $region5: #{_forward.1} parent=1 // pred_fallthru
      _
    // Predicated region
    $region6: #{_forward.1} parent=1 // pred_check
      _
    $region7: #{_forward.1} parent=1 // pred_check_branch
      %15 = sbr.rel (0) target = $region9
    $region8: #{_forward.1} parent=1 // pred_region
      %s17 = ssub.s32 256, 256
      %18 = vsyncadd [#allocation3], %s17
      %s19 = sshll.u32 [#allocation2], 4
      %s20 = int_to_ptr.vmem [resolvable:$true] %s19
      %25 = dma.hbm_to_vmem [thread:$0]  %s1, 256, %s20, [#allocation3], 64, 64, 4
    $region9: #{_forward.1} parent=1 // pred_fallthru
      _
    // Predicated region
    $region10: #{_forward.1} parent=1 // pred_check
      _
    $region11: #{_forward.1} parent=1 // pred_check_branch
      %27 = sbr.rel (0) target = $region13
    $region12: #{_forward.1} parent=1 // pred_region
      _
    $region13: #{_forward.1} parent=1 // pred_fallthru
      _
    // Predicated region
    $region14: #{_forward.1} parent=1 // pred_check
      _
    $region15: #{_forward.1} parent=1 // pred_check_branch
      %29 = sbr.rel (0) target = $region17
    $region16: #{_forward.1} parent=1 // pred_region
      _
    $region17: #{_forward.1} parent=1 // pred_fallthru
      _
    // Predicated region
    $region18: #{_forward.1} parent=1 // pred_check
      _
    $region19: #{_forward.1} parent=1 // pred_check_branch
      %31 = sbr.rel (0) target = $region21
    $region20: #{_forward.1} parent=1 // pred_region
      _
    $region21: #{_forward.1} parent=1 // pred_fallthru
      _
    // Predicated region
    $region22: #{_forward.1} parent=1 // pred_check
      _
    $region23: #{_forward.1} parent=1 // pred_check_branch
      %33 = sbr.rel (0) target = $region25
    $region24: #{_forward.1} parent=1 // pred_region
      %34 = dma.done [#allocation3], 256
    $region25: #{_forward.1} parent=1 // pred_fallthru
      _
    %v36 = vld [vmem:[%s0] sm:$0xf]
    %v37 = vld [vmem:[%s0 + $0x4] sm:$0xf]
    %v38 = vld [vmem:[#allocation2] sm:$0xf]
    %v39 = vld [vmem:[#allocation2 + $0x4] sm:$0xf]
    %v40 = vld [vmem:[#allocation2 + $0x8] sm:$0xf]
    %v41 = vld [vmem:[#allocation2 + $0xc] sm:$0xf]
    %v42 = vld [vmem:[%s2] sm:$0x1]
    %v44 = vlaneseq
    %v45 = vshrl.u32 %v44, 7
    %v46 = vsub.s32 0, %v45
    %v47 = vrot.slane %v42, %v46
    %v51 = vunpack.c.l.b16 %v36
    %v52 = vunpack.c.l.b16 %v37
    %v53 = vpack.c.b16 %v52, %v51
    %v58 = vunpack.c.l.b16 %v38
    %v59 = vunpack.c.l.b16 %v39
    %v60 = vunpack.c.l.b16 %v40
    %v61 = vunpack.c.l.b16 %v41
    %v62 = vpack.c.b16 %v59, %v58
    %v63 = vpack.c.b16 %v61, %v60
    %vm66 = vcmask 261120
    %v68 = vsel %vm66, %v53, 0
    %70 = vmatprep.subr.bf16.mxu0 0
    %71 = vmatpush1.bf16.msra.mxu0 %v62
    %72 = vmatprep.subr.bf16.mxu0 0
    %73 = vmatpush1.bf16.msra.mxu0 %v63
    %74 = vmatprep.subr.bf16.mxu0 0
    %75 = vmatpush1.bf16.msra.mxu0 0
    %76 = vmatprep.subr.bf16.mxu0 0
    %77 = vmatpush1.bf16.msra.mxu0 0
    %78 = vmatprep.subr.bf16.mxu0 0
    %79 = vmatpush1.bf16.msra.mxu0 0
    %80 = vmatprep.subr.bf16.mxu0 0
    %81 = vmatpush1.bf16.msra.mxu0 0
    %82 = vmatprep.subr.bf16.mxu0 0
    %83 = vmatpush1.bf16.msra.mxu0 0
    %84 = vmatprep.subr.bf16.mxu0 0
    %85 = vmatpush1.bf16.msra.mxu0 0
    %86 = vmatprep.subr.bf16.mxu0 0
    %87 = vmatpush1.bf16.msra.mxu0 0
    %88 = vmatprep.subr.bf16.mxu0 0
    %89 = vmatpush1.bf16.msra.mxu0 0
    %90 = vmatprep.subr.bf16.mxu0 0
    %91 = vmatpush1.bf16.msra.mxu0 0
    %92 = vmatprep.subr.bf16.mxu0 0
    %93 = vmatpush1.bf16.msra.mxu0 0
    %94 = vmatprep.subr.bf16.mxu0 0
    %95 = vmatpush1.bf16.msra.mxu0 0
    %96 = vmatprep.subr.bf16.mxu0 0
    %97 = vmatpush1.bf16.msra.mxu0 0
    %98 = vmatprep.subr.bf16.mxu0 0
    %99 = vmatpush1.bf16.msra.mxu0 0
    %100 = vmatprep.subr.bf16.mxu0 0
    %101 = vmatpush1.bf16.msra.mxu0 0
    %102 = vmatprep.mubr.bf16.mxu0 0
    %103 = vmatmul.mubr.bf16.gmra.mrb[0].mxu0 %v68
    %v104 = vpop.f32.mrb[0].mxu0
    %v105 = vadd.f32 %v47, %v104
    %v106 = vpop.f32.mrb[0].mxu0
    %v107 = vpop.f32.mrb[0].mxu0
    %v108 = vadd.f32 %v47, %v107
    %v109 = vpop.f32.mrb[0].mxu0
    %110 = vdwg.mxu0
    %v111 = vmax.f32 %v105, 0.0
    %v112 = vmax.f32 %v108, 0.0
    %v113 = vpack.c.bf16 %v112, %v111
    %v114 = vld [vmem:[%s3] sm:$0xf]
    %v115 = vld [vmem:[%s3 + $0x4] sm:$0xf]
    %v116 = vld [vmem:[%s3 + $0x8] sm:$0xf]
    %v117 = vld [vmem:[%s3 + $0xc] sm:$0xf]
    %v118 = vld [vmem:[%s3 + $0x10] sm:$0xf]
    %v119 = vld [vmem:[%s3 + $0x14] sm:$0xf]
    %v120 = vld [vmem:[%s3 + $0x18] sm:$0xf]
    %v121 = vld [vmem:[%s3 + $0x1c] sm:$0xf]
    %v122 = vld [vmem:[%s4] sm:$0x1]
    %v124 = vlaneseq
    %v125 = vshrl.u32 %v124, 7
    %v126 = vsub.s32 0, %v125
    %v127 = vrot.slane %v122, %v126
    %v137 = vunpack.c.l.b16 %v114
    %v138 = vunpack.c.l.b16 %v115
    %v139 = vunpack.c.l.b16 %v116
    %v140 = vunpack.c.l.b16 %v117
    %v141 = vunpack.c.l.b16 %v118
    %v142 = vunpack.c.l.b16 %v119
    %v143 = vunpack.c.l.b16 %v120
    %v144 = vunpack.c.l.b16 %v121
    %v145 = vpack.c.b16 %v138, %v137
    %v146 = vpack.c.b16 %v140, %v139
    %v147 = vpack.c.b16 %v142, %v141
    %v148 = vpack.c.b16 %v144, %v143
    %vm153 = vcmask 523264
    %v155 = vsel %vm153, %v113, 0
    %157 = vmatprep.subr.bf16.mxu0 0
    %158 = vmatpush1.bf16.msra.mxu0 %v145
    %159 = vmatprep.subr.bf16.mxu0 0
    %160 = vmatpush1.bf16.msra.mxu0 %v146
    %161 = vmatprep.subr.bf16.mxu0 0
    %162 = vmatpush1.bf16.msra.mxu0 %v147
    %163 = vmatprep.subr.bf16.mxu0 0
    %164 = vmatpush1.bf16.msra.mxu0 %v148
    %165 = vmatprep.subr.bf16.mxu0 0
    %166 = vmatpush1.bf16.msra.mxu0 0
    %167 = vmatprep.subr.bf16.mxu0 0
    %168 = vmatpush1.bf16.msra.mxu0 0
    %169 = vmatprep.subr.bf16.mxu0 0
    %170 = vmatpush1.bf16.msra.mxu0 0
    %171 = vmatprep.subr.bf16.mxu0 0
    %172 = vmatpush1.bf16.msra.mxu0 0
    %173 = vmatprep.subr.bf16.mxu0 0
    %174 = vmatpush1.bf16.msra.mxu0 0
    %175 = vmatprep.subr.bf16.mxu0 0
    %176 = vmatpush1.bf16.msra.mxu0 0
    %177 = vmatprep.subr.bf16.mxu0 0
    %178 = vmatpush1.bf16.msra.mxu0 0
    %179 = vmatprep.subr.bf16.mxu0 0
    %180 = vmatpush1.bf16.msra.mxu0 0
    %181 = vmatprep.subr.bf16.mxu0 0
    %182 = vmatpush1.bf16.msra.mxu0 0
    %183 = vmatprep.subr.bf16.mxu0 0
    %184 = vmatpush1.bf16.msra.mxu0 0
    %185 = vmatprep.subr.bf16.mxu0 0
    %186 = vmatpush1.bf16.msra.mxu0 0
    %187 = vmatprep.subr.bf16.mxu0 0
    %188 = vmatpush1.bf16.msra.mxu0 0
    %189 = vmatprep.mubr.bf16.mxu0 0
    %190 = vmatmul.mubr.bf16.gmra.mrb[0].mxu0 %v155
    %v191 = vpop.f32.mrb[0].mxu0
    %v192 = vadd.f32 %v127, %v191
    %v193 = vpop.f32.mrb[0].mxu0
    %v194 = vpop.f32.mrb[0].mxu0
    %v195 = vadd.f32 %v127, %v194
    %v196 = vpop.f32.mrb[0].mxu0
    %197 = vdwg.mxu0
    %198 = vst.msk [vmem:[#allocation5] sm:$0xff] %vm66, %v192
    %199 = vst.msk [vmem:[#allocation5 + $0x8] sm:$0xff] %vm66, %v195
    // Predicated region
    $region26: #{_forward.1} parent=1 // pred_check
      _
    $region27: #{_forward.1} parent=1 // pred_check_branch
      %201 = sbr.rel (0) target = $region29
    $region28: #{_forward.1} parent=1 // pred_region
      %s203 = ssub.s32 256, 256
      %204 = vsyncadd [#allocation4], %s203
      %s205 = sshll.u32 [#allocation5], 4
      %s206 = int_to_ptr.vmem [resolvable:$true] %s205
      %211 = dma.vmem_to_hbm [thread:$0]  %s206, 256, %s5, [#allocation4], 128, 128, 8
    $region29: #{_forward.1} parent=1 // pred_fallthru
      _
    // Predicated region
    $region30: #{_forward.1} parent=1 // pred_check
      _
    $region31: #{_forward.1} parent=1 // pred_check_branch
      %213 = sbr.rel (0) target = $region33
    $region32: #{_forward.1} parent=1 // pred_region
      %214 = dma.done [#allocation4], 256
    $region33: #{_forward.1} parent=1 // pred_fallthru
      _
    %215 = vsyncpa [#allocation3], 1
    %216 = vsyncpa [#allocation4], 1

</llo_original>
